<compile_context>
chip_gen: v6e
topology: v6e:2x2x1
jax: 0.10.0
libtpu: 0.0.40
codegen_flags: <defaults>
</compile_context>

<pallas_src>
import functools

import jax
import jax.numpy as jnp
from jax.experimental import pallas as pl
from jax.experimental.pallas import tpu as pltpu

# Deterministic "constructor" parameters of TSP_Loss(lambda_CDC_weight, Loss_Base_weight)
LOSS_A_WEIGHT = 0.2   # lambda_CDC_weight
LOSS_C_WEIGHT = 1.0   # Loss_Base_weight

NUM_CORE_SPLITS = 2   # leading "parallel" grid axis (v7x 2-TC split); harmless on 1-TC chips
MAX_TILE_B = 2048     # lane-dim batch tile cap (multiple of 128); tiny VMEM footprint even on v7x


def _round_up(x, m):
    return (x + m - 1) // m * m


def _tsp_loss_kernel(aux_ref, x0_ref, x1_ref, out_ref, acc_ref, *, inv_b, w_a, w_c):
    """One batch tile. aux = [S; D; t0; t1; cls] stacked along sublanes, batch along lanes."""
    tile = pl.program_id(1)

    @pl.when(tile == 0)
    def _init():
        acc_ref[...] = jnp.zeros_like(acc_ref)

    aux = aux_ref[...].astype(jnp.float32)      # (5, TB)
    x0 = x0_ref[...].astype(jnp.float32)        # (C, TB)  shallow model probs
    x1 = x1_ref[...].astype(jnp.float32)        # (C, TB)  deep model probs

    s = aux[0:1, :]                             # (1, TB)
    d = aux[1:2, :]
    t0 = aux[2:3, :]
    t1 = aux[3:4, :]
    idx = aux[4:5, :].astype(jnp.int32)         # class index (exact for C < 2^24)

    C, TB = x0.shape

    # gather(dim=1, index=cls) as a sublane one-hot; one mask reused for both gathers.
    row = jax.lax.broadcasted_iota(jnp.int32, (C, TB), 0)
    hit = row == idx                                                    # (C, TB)
    shallow = jnp.sum(jnp.where(hit, x0, 0.0), axis=0, keepdims=True)   # (1, TB)
    deep = jnp.sum(jnp.where(hit, x1, 0.0), axis=0, keepdims=True)      # (1, TB)

    # ---- Loss A (hinge), algebraically simplified -------------------------------
    # original: upper = (sh - dp - s + d) * (sh > dp); down = (dp - sh - d + s) * (dp >= sh)
    #           hinge = max(upper + down, 0)
    # exactly one branch fires -> hinge = max(|sh - dp| - select(sh > dp, s - d, d - s), 0)
    diff = shallow - deep
    sd = s - d
    hinge = jnp.maximum(jnp.abs(diff) - jnp.where(diff > 0.0, sd, -sd), 0.0)  # (1, TB)

    # ---- Loss C (squared error) --------------------------------------------------
    es = s - t0
    ed = d - t1
    sq = es * es + ed * ed                                              # (1, TB)

    # Weighted per-lane contributions; cross-lane reduce happens once, at finalize.
    acc_ref[...] += jnp.float32(w_a) * hinge + jnp.float32(w_c) * sq

    @pl.when(tile == pl.num_programs(1) - 1)
    def _finalize():
        out_ref[...] = jnp.sum(acc_ref[...], axis=1, keepdims=True) * jnp.float32(inv_b)


def tsp_loss(output_S, output_D, X, targets, *,
             loss_a_weight=LOSS_A_WEIGHT, loss_c_weight=LOSS_C_WEIGHT):
    """X is a list/tuple of two (B, C) arrays, mirroring the PyTorch module."""
    x0, x1 = X
    B, C = x0.shape

    # Lane-dense layout plumbing: batch along the 128-lane (last) axis.
    aux = jnp.concatenate(
        [output_S.astype(jnp.float32),
         output_D.astype(jnp.float32),
         targets.astype(jnp.float32)], axis=1).T        # (5, B)
    x0_t = jnp.transpose(x0)                            # (C, B)
    x1_t = jnp.transpose(x1)                            # (C, B)

    tile_b = min(_round_up(B, 128), MAX_TILE_B)
    b_pad = _round_up(B, NUM_CORE_SPLITS * tile_b)
    tiles_per_core = b_pad // (NUM_CORE_SPLITS * tile_b)

    pad = b_pad - B
    if pad:
        # Zero-padded rows contribute exactly 0 to both loss terms, so no masking needed.
        aux = jnp.pad(aux, ((0, 0), (0, pad)))
        x0_t = jnp.pad(x0_t, ((0, 0), (0, pad)))
        x1_t = jnp.pad(x1_t, ((0, 0), (0, pad)))

    def bmap(c, i):
        return (0, c * tiles_per_core + i)

    kernel = functools.partial(
        _tsp_loss_kernel, inv_b=1.0 / B, w_a=loss_a_weight, w_c=loss_c_weight)

    partials = pl.pallas_call(
        kernel,
        out_shape=jax.ShapeDtypeStruct((NUM_CORE_SPLITS, 1, 1), jnp.float32),
        grid_spec=pltpu.PrefetchScalarGridSpec(
            num_scalar_prefetch=0,
            grid=(NUM_CORE_SPLITS, tiles_per_core),
            in_specs=[
                pl.BlockSpec((5, tile_b), bmap),
                pl.BlockSpec((C, tile_b), bmap),
                pl.BlockSpec((C, tile_b), bmap),
            ],
            out_specs=pl.BlockSpec((None, 1, 1), lambda c, i: (c, 0, 0)),
            scratch_shapes=[pltpu.VMEM((1, tile_b), jnp.float32)],
        ),
        compiler_params=pltpu.CompilerParams(
            dimension_semantics=("parallel", "arbitrary"),
            vmem_limit_bytes=32 * 1024 * 1024,
        ),
    )(aux, x0_t, x1_t)

    # Per-core partials are already divided by the true B; just add them.
    return jnp.sum(partials)


def _reference(output_S, output_D, X, targets):
    # Pure-JAX reference of the PyTorch semantics, for a sanity check.
    x0, x1 = X
    idx = targets[:, 2].astype(jnp.int32)
    shallow = jnp.take_along_axis(x0, idx[:, None], axis=1)
    deep = jnp.take_along_axis(x1, idx[:, None], axis=1)
    upper = (shallow - deep - output_S + output_D) * (shallow > deep)
    down = (deep - shallow - output_D + output_S) * (deep >= shallow)
    B = output_S.shape[0]
    loss_a = jnp.sum(jnp.maximum(upper + down, 0.0)) / B
    loss_c = jnp.sum(
        (output_S - targets[:, 0:1]) ** 2 + (output_D - targets[:, 1:2]) ** 2
    ) / B
    return LOSS_A_WEIGHT * loss_a + LOSS_C_WEIGHT * loss_c


if __name__ == "__main__":
    key = jax.random.PRNGKey(0)
    k1, k2, k3, k4, k5, k6 = jax.random.split(key, 6)

    B, C = 8, 4  # batch, cls dim

    output_S = jax.random.uniform(k1, (B, 1), dtype=jnp.float32)
    output_D = jax.random.uniform(k2, (B, 1), dtype=jnp.float32)
    x0 = jax.nn.softmax(jax.random.normal(k3, (B, C), dtype=jnp.float32), axis=-1)
    x1 = jax.nn.softmax(jax.random.normal(k4, (B, C), dtype=jnp.float32), axis=-1)

    # targets: col 0/1 regression targets, col 2 class index (stored as float, like torch)
    tgt_reg = jax.random.uniform(k5, (B, 2), dtype=jnp.float32)
    tgt_idx = jax.random.randint(k6, (B, 1), 0, C).astype(jnp.float32)
    targets = jnp.concatenate([tgt_reg, tgt_idx], axis=1)  # (B, 3)

    loss = tsp_loss(output_S, output_D, [x0, x1], targets)
    jax.block_until_ready(loss)

    ref = _reference(output_S, output_D, [x0, x1], targets)
    assert jnp.allclose(loss, ref, atol=1e-5, rtol=1e-5), (loss, ref)

    print("KERNEL_OK")
</pallas_src>

<mosaic_0001>
module attributes {stable_mosaic.version = 11 : i64} {
  func.func @_tsp_loss_kernel(%arg0: i32, %arg1: i32, %arg2: memref<5x128xf32, #tpu.memory_space<vmem>>, %arg3: memref<4x128xf32, #tpu.memory_space<vmem>>, %arg4: memref<4x128xf32, #tpu.memory_space<vmem>>, %arg5: memref<1x1x1xf32, #tpu.memory_space<vmem>>, %arg6: memref<1x128xf32, #tpu.memory_space<vmem>>) attributes {dimension_semantics = [#tpu.dimension_semantics<parallel>, #tpu.dimension_semantics<arbitrary>], iteration_bounds = array<i64: 2, 1>, scalar_prefetch = 0 : i64, scratch_operands = 1 : i64, tpu.core_type = #tpu.core_type<tc>, window_params = [{transform_indices = @transform_0, window_bounds = array<i64: 5, 128>}, {transform_indices = @transform_1, window_bounds = array<i64: 4, 128>}, {transform_indices = @transform_2, window_bounds = array<i64: 4, 128>}, {transform_indices = @transform_3, window_bounds = array<i64: 1, 1, 1>}]} {
    %c0_i32 = arith.constant 0 : i32
    %0 = arith.cmpi eq, %arg1, %c0_i32 : i32
    %1 = arith.extui %0 : i1 to i32
    %c0_i32_0 = arith.constant 0 : i32
    %2 = arith.cmpi ne, %1, %c0_i32_0 : i32
    scf.if %2 {
      %cst_20 = arith.constant 0.000000e+00 : f32
      %50 = vector.broadcast %cst_20 : f32 to vector<1x128xf32>
      %c0_21 = arith.constant 0 : index
      %c0_22 = arith.constant 0 : index
      %51 = vector.load %arg6[%c0_21, %c0_22] : memref<1x128xf32, #tpu.memory_space<vmem>>, vector<1x128xf32>
      tpu.vector_store %arg6[%c0_21, %c0_22], %50 {strides = array<i32>} : memref<1x128xf32, #tpu.memory_space<vmem>>, vector<1x128xf32>,
    } else {
    }
    %c0 = arith.constant 0 : index
    %c0_1 = arith.constant 0 : index
    %3 = vector.load %arg2[%c0, %c0_1] : memref<5x128xf32, #tpu.memory_space<vmem>>, vector<5x128xf32>
    %c0_2 = arith.constant 0 : index
    %c0_3 = arith.constant 0 : index
    %4 = vector.load %arg3[%c0_2, %c0_3] : memref<4x128xf32, #tpu.memory_space<vmem>>, vector<4x128xf32>
    %c0_4 = arith.constant 0 : index
    %c0_5 = arith.constant 0 : index
    %5 = vector.load %arg4[%c0_4, %c0_5] : memref<4x128xf32, #tpu.memory_space<vmem>>, vector<4x128xf32>
    %6 = vector.extract_strided_slice %3 {offsets = [0, 0], sizes = [1, 128], strides = [1, 1]} : vector<5x128xf32> to vector<1x128xf32>
    %7 = vector.extract_strided_slice %3 {offsets = [1, 0], sizes = [1, 128], strides = [1, 1]} : vector<5x128xf32> to vector<1x128xf32>
    %8 = vector.extract_strided_slice %3 {offsets = [2, 0], sizes = [1, 128], strides = [1, 1]} : vector<5x128xf32> to vector<1x128xf32>
    %9 = vector.extract_strided_slice %3 {offsets = [3, 0], sizes = [1, 128], strides = [1, 1]} : vector<5x128xf32> to vector<1x128xf32>
    %10 = vector.extract_strided_slice %3 {offsets = [4, 0], sizes = [1, 128], strides = [1, 1]} : vector<5x128xf32> to vector<1x128xf32>
    %11 = arith.fptosi %10 : vector<1x128xf32> to vector<1x128xi32>
    %12 = tpu.iota {dimensions = array<i32: 0>} : vector<4x128xi32>
    %13 = vector.broadcast %11 : vector<1x128xi32> to vector<4x128xi32>
    %14 = arith.cmpi eq, %12, %13 : vector<4x128xi32>
    %cst = arith.constant 0.000000e+00 : f32
    %15 = vector.broadcast %cst : f32 to vector<4x128xf32>
    %16 = arith.select %14, %4, %15 : vector<4x128xi1>, vector<4x128xf32>
    %cst_6 = arith.constant dense<0.000000e+00> : vector<128xf32>
    %17 = vector.multi_reduction <add>, %16, %cst_6 [0] : vector<4x128xf32> to vector<128xf32>
    %18 = vector.shape_cast %17 : vector<128xf32> to vector<1x128xf32>
    %cst_7 = arith.constant 0.000000e+00 : f32
    %19 = vector.broadcast %cst_7 : f32 to vector<4x128xf32>
    %20 = arith.select %14, %5, %19 : vector<4x128xi1>, vector<4x128xf32>
    %cst_8 = arith.constant dense<0.000000e+00> : vector<128xf32>
    %21 = vector.multi_reduction <add>, %20, %cst_8 [0] : vector<4x128xf32> to vector<128xf32>
    %22 = vector.shape_cast %21 : vector<128xf32> to vector<1x128xf32>
    %23 = arith.subf %18, %22 : vector<1x128xf32>
    %24 = arith.subf %6, %7 : vector<1x128xf32>
    %25 = math.absf %23 : vector<1x128xf32>
    %cst_9 = arith.constant 0.000000e+00 : f32
    %26 = vector.broadcast %cst_9 : f32 to vector<1x128xf32>
    %27 = arith.cmpf ogt, %23, %26 : vector<1x128xf32>
    %cst_10 = arith.constant 0.000000e+00 : f32
    %28 = vector.broadcast %cst_10 : f32 to vector<1x128xf32>
    %29 = arith.subf %28, %24 : vector<1x128xf32>
    %30 = arith.select %27, %24, %29 : vector<1x128xi1>, vector<1x128xf32>
    %31 = arith.subf %25, %30 : vector<1x128xf32>
    %cst_11 = arith.constant 0.000000e+00 : f32
    %32 = vector.broadcast %cst_11 : f32 to vector<1x128xf32>
    %33 = arith.maximumf %31, %32 : vector<1x128xf32>
    %34 = arith.subf %6, %8 : vector<1x128xf32>
    %35 = arith.subf %7, %9 : vector<1x128xf32>
    %36 = arith.mulf %34, %34 : vector<1x128xf32>
    %37 = arith.mulf %35, %35 : vector<1x128xf32>
    %38 = arith.addf %36, %37 : vector<1x128xf32>
    %c0_12 = arith.constant 0 : index
    %c0_13 = arith.constant 0 : index
    %39 = vector.load %arg6[%c0_12, %c0_13] : memref<1x128xf32, #tpu.memory_space<vmem>>, vector<1x128xf32>
    %cst_14 = arith.constant 2.000000e-01 : f32
    %40 = vector.broadcast %cst_14 : f32 to vector<1x128xf32>
    %41 = arith.mulf %40, %33 : vector<1x128xf32>
    %cst_15 = arith.constant 1.000000e+00 : f32
    %42 = vector.broadcast %cst_15 : f32 to vector<1x128xf32>
    %43 = arith.mulf %42, %38 : vector<1x128xf32>
    %44 = arith.addf %41, %43 : vector<1x128xf32>
    %45 = arith.addf %39, %44 : vector<1x128xf32>
    %c0_16 = arith.constant 0 : index
    %c0_17 = arith.constant 0 : index
    %46 = vector.load %arg6[%c0_16, %c0_17] : memref<1x128xf32, #tpu.memory_space<vmem>>, vector<1x128xf32>
    tpu.vector_store %arg6[%c0_16, %c0_17], %45 {strides = array<i32>} : memref<1x128xf32, #tpu.memory_space<vmem>>, vector<1x128xf32>,
    %c0_i32_18 = arith.constant 0 : i32
    %47 = arith.cmpi eq, %arg1, %c0_i32_18 : i32
    %48 = arith.extui %47 : i1 to i32
    %c0_i32_19 = arith.constant 0 : i32
    %49 = arith.cmpi ne, %48, %c0_i32_19 : i32
    scf.if %49 {
      %c0_20 = arith.constant 0 : index
      %c0_21 = arith.constant 0 : index
      %50 = vector.load %arg6[%c0_20, %c0_21] : memref<1x128xf32, #tpu.memory_space<vmem>>, vector<1x128xf32>
      %cst_22 = arith.constant dense<0.000000e+00> : vector<1xf32>
      %51 = vector.multi_reduction <add>, %50, %cst_22 [1] : vector<1x128xf32> to vector<1xf32>
      %52 = vector.shape_cast %51 : vector<1xf32> to vector<1x1xf32>
      %cst_23 = arith.constant 1.250000e-01 : f32
      %53 = vector.broadcast %cst_23 : f32 to vector<1x1xf32>
      %54 = arith.mulf %52, %53 : vector<1x1xf32>
      %c0_24 = arith.constant 0 : index
      %c0_25 = arith.constant 0 : index
      %c0_26 = arith.constant 0 : index
      %55 = vector.load %arg5[%c0_24, %c0_25, %c0_26] : memref<1x1x1xf32, #tpu.memory_space<vmem>>, vector<1x1x1xf32>
      %56 = vector.shape_cast %55 : vector<1x1x1xf32> to vector<1x1xf32>
      %57 = vector.shape_cast %54 : vector<1x1xf32> to vector<1x1x1xf32>
      tpu.vector_store %arg5[%c0_24, %c0_25, %c0_26], %57 {strides = array<i32>} : memref<1x1x1xf32, #tpu.memory_space<vmem>>, vector<1x1x1xf32>,
    } else {
    }
    return
  }
  func.func @transform_0(%arg0: i32, %arg1: i32) -> (i32, i32) {
    %c1_i32 = arith.constant 1 : i32
    %0 = arith.muli %arg0, %c1_i32 : i32
    %1 = arith.addi %0, %arg1 : i32
    %c0_i32 = arith.constant 0 : i32
    %c0_i32_0 = arith.constant 0 : i32
    return %c0_i32, %1 : i32, i32
  }
  func.func @transform_1(%arg0: i32, %arg1: i32) -> (i32, i32) {
    %c1_i32 = arith.constant 1 : i32
    %0 = arith.muli %arg0, %c1_i32 : i32
    %1 = arith.addi %0, %arg1 : i32
    %c0_i32 = arith.constant 0 : i32
    %c0_i32_0 = arith.constant 0 : i32
    return %c0_i32, %1 : i32, i32
  }
  func.func @transform_2(%arg0: i32, %arg1: i32) -> (i32, i32) {
    %c1_i32 = arith.constant 1 : i32
    %0 = arith.muli %arg0, %c1_i32 : i32
    %1 = arith.addi %0, %arg1 : i32
    %c0_i32 = arith.constant 0 : i32
    %c0_i32_0 = arith.constant 0 : i32
    return %c0_i32, %1 : i32, i32
  }
  func.func @transform_3(%arg0: i32, %arg1: i32) -> (i32, i32, i32) {
    %c0_i32 = arith.constant 0 : i32
    %c0_i32_0 = arith.constant 0 : i32
    %c0_i32_1 = arith.constant 0 : i32
    return %arg0, %c0_i32, %c0_i32_0 : i32, i32, i32
  }
}

</mosaic_0001>

<llo_original>
// kernel: tpu_custom_call.1
$region0: #{tpu_custom_call.1}
  #allocation0 [shape = 'u32[]', space=smem, size = 0x4, offset = 0x4, fixed_abs, tag = 'smem constant byte address 0x4 - core index']
  #allocation1 [shape = 'u32[144,128]{1,0:T(1,128)}', space=vmem, size = 0x12000, scoped, tag = 'internal scratch']
  #allocation2 [shape = 'f32[1,128]{1,0:T(1,128)}', space=vmem, size = 0x200, scoped, tag = 'scratch operand']
  %s0 = inlined_call_operand.hbm [shape: f32[5,256], index: 0, kind: input, shape index: {}]
  %s1 = inlined_call_operand.hbm [shape: f32[4,256], index: 1, kind: input, shape index: {}]
  %s2 = inlined_call_operand.hbm [shape: f32[4,256], index: 2, kind: input, shape index: {}]
  %s3 = inlined_call_operand.vmem [shape: f32[2,1,1], index: 3, kind: output, shape index: {}]
  %s4 = sld [smem:[#allocation0]]
  $region65: #{tpu_custom_call.1} parent=0
    _
  %s6 = ssub.s32 1, %s4
  %s7 = scalar_select 0, %s6, %s4
  $region1: #{tpu_custom_call.1} parent=0
    #allocation3 [shape = 'u8[8192]{0}', space=vmem, size = 0x2000, scoped, tag = 'input window, operand 0']
    #allocation4 [shape = 's32[2]{0}', space=sflag, size = 0x8, scoped, tag = 'scoped memory for tpu_custom_call.1']
    #allocation5 [shape = 'u8[4096]{0}', space=vmem, size = 0x1000, scoped, tag = 'input window, operand 1']
    #allocation6 [shape = 's32[2]{0}', space=sflag, size = 0x8, scoped, tag = 'scoped memory for tpu_custom_call.1']
    #allocation7 [shape = 'u8[4096]{0}', space=vmem, size = 0x1000, scoped, tag = 'input window, operand 2']
    %8 = vsyncpa [#allocation4], 0
    %s9 = scalar_lea.sflag [#allocation4], 1
    %10 = vsyncpa %s9, 0
    %11 = vsyncpa [#allocation6], 0
    %s12 = scalar_lea.sflag [#allocation6], 1
    %13 = vsyncpa %s12, 0
    loop: start=0, step=1, limit=4
    $region2: #{tpu_custom_call.1} parent=1 // loop_pre_header
      _
    $region3: #{tpu_custom_call.1} parent=1 // loop_header
      %s15 = sphi 0, %s19
      %p16 = scmp.ge.s32.totalorder %s15, 4
      %s22 = sphi 0, %s34
      %s23 = sphi 0, %s30
      %s24 = sphi 0, %s22
      %s25 = sphi 0, %s23
      %s26 = sphi 0, %s24
      %s27 = sphi 0, %s25
      %s39 = sphi 0, %s41
      %s42 = sphi 0, %s39
      %s43 = sphi 0, %s42
      %s59 = sphi 0, %s43
      %s67 = sphi 0, %s69
      %s70 = sphi 0, %s67
      %s71 = sphi 0, %s70
      %s87 = sphi 0, %s71
      %s95 = sphi 0, %s97
      %s98 = sphi 0, %s95
      %s99 = sphi 0, %s98
      %s115 = sphi 0, %s99
      %s121 = sphi 0, %s123
      %s124 = sphi 0, %s121
      %s125 = sphi 0, %s124
      %s141 = sphi 0, %s125
    $region4: #{tpu_custom_call.1} parent=1 // loop_header_branch
      %18 = sbr.rel (%p16) target = $region8
    $region5: #{tpu_custom_call.1} parent=1 // loop_body
      %s20 = ssub.s32 %s15, 1
      %s21 = ssub.s32 %s15, 2
      %s28 = sadd.s32 1, %s23
      %p29 = scmp.ge.s32.totalorder %s28, 1
      %s30 = scalar_select %p29, 0, %s28
      %s31 = sadd.s32 1, %s22
      %s32 = scalar_select %p29, %s31, %s22
      %p33 = scmp.ge.s32.totalorder %s32, 2
      %s34 = scalar_select %p33, 0, %s32
      %s35 = sadd.s32 %s22, %s23
      %s36 = sadd.s32 %s34, %s30
      %s37 = ssub.s32 %s35, %s36
      %p38 = scmp.eq.s32.totalorder %s37, 0
      %s40 = sadd.s32 %s39, 1
      %s41 = scalar_select %p38, %s39, %s40
      %p44 = pneg %p38
      %p45 = scmp.eq.s32.totalorder %s15, 1
      %p46 = por %p44, %p45
      %p47 = scmp.ne.s32.totalorder %s39, %s42
      %p48 = scmp.eq.s32.totalorder %s15, 0
      %p49 = por %p47, %p48
      %p50 = scmp.ne.s32.totalorder %s39, %s42
      %p51 = scmp.eq.s32.totalorder %s20, 1
      %p52 = por %p50, %p51
      %p53 = scmp.ne.s32.totalorder %s42, %s43
      %p54 = scmp.eq.s32.totalorder %s20, 0
      %p55 = por %p53, %p54
      %p56 = scmp.ne.s32.totalorder %s42, %s43
      %p57 = scmp.eq.s32.totalorder %s21, 1
      %p58 = por %p56, %p57
      %p60 = scmp.ne.s32.totalorder %s43, %s59
      %p61 = scmp.eq.s32.totalorder %s21, 0
      %p62 = por %p60, %p61
      %s63 = sadd.s32 %s22, %s23
      %s64 = sadd.s32 %s34, %s30
      %s65 = ssub.s32 %s63, %s64
      %p66 = scmp.eq.s32.totalorder %s65, 0
      %s68 = sadd.s32 %s67, 1
      %s69 = scalar_select %p66, %s67, %s68
      %p72 = pneg %p66
      %p73 = scmp.eq.s32.totalorder %s15, 1
      %p74 = por %p72, %p73
      %p75 = scmp.ne.s32.totalorder %s67, %s70
      %p76 = scmp.eq.s32.totalorder %s15, 0
      %p77 = por %p75, %p76
      %p78 = scmp.ne.s32.totalorder %s67, %s70
      %p79 = scmp.eq.s32.totalorder %s20, 1
      %p80 = por %p78, %p79
      %p81 = scmp.ne.s32.totalorder %s70, %s71
      %p82 = scmp.eq.s32.totalorder %s20, 0
      %p83 = por %p81, %p82
      %p84 = scmp.ne.s32.totalorder %s70, %s71
      %p85 = scmp.eq.s32.totalorder %s21, 1
      %p86 = por %p84, %p85
      %p88 = scmp.ne.s32.totalorder %s71, %s87
      %p89 = scmp.eq.s32.totalorder %s21, 0
      %p90 = por %p88, %p89
      %s91 = sadd.s32 %s22, %s23
      %s92 = sadd.s32 %s34, %s30
      %s93 = ssub.s32 %s91, %s92
      %p94 = scmp.eq.s32.totalorder %s93, 0
      %s96 = sadd.s32 %s95, 1
      %s97 = scalar_select %p94, %s95, %s96
      %p100 = pneg %p94
      %p101 = scmp.eq.s32.totalorder %s15, 1
      %p102 = por %p100, %p101
      %p103 = scmp.ne.s32.totalorder %s95, %s98
      %p104 = scmp.eq.s32.totalorder %s15, 0
      %p105 = por %p103, %p104
      %p106 = scmp.ne.s32.totalorder %s95, %s98
      %p107 = scmp.eq.s32.totalorder %s20, 1
      %p108 = por %p106, %p107
      %p109 = scmp.ne.s32.totalorder %s98, %s99
      %p110 = scmp.eq.s32.totalorder %s20, 0
      %p111 = por %p109, %p110
      %p112 = scmp.ne.s32.totalorder %s98, %s99
      %p113 = scmp.eq.s32.totalorder %s21, 1
      %p114 = por %p112, %p113
      %p116 = scmp.ne.s32.totalorder %s99, %s115
      %p117 = scmp.eq.s32.totalorder %s21, 0
      %p118 = por %p116, %p117
      %s119 = ssub.s32 %s22, %s34
      %p120 = scmp.eq.s32.totalorder %s119, 0
      %s122 = sadd.s32 %s121, 1
      %s123 = scalar_select %p120, %s121, %s122
      %p126 = pneg %p120
      %p127 = scmp.eq.s32.totalorder %s15, 1
      %p128 = por %p126, %p127
      %p129 = scmp.ne.s32.totalorder %s121, %s124
      %p130 = scmp.eq.s32.totalorder %s15, 0
      %p131 = por %p129, %p130
      %p132 = scmp.ne.s32.totalorder %s121, %s124
      %p133 = scmp.eq.s32.totalorder %s20, 1
      %p134 = por %p132, %p133
      %p135 = scmp.ne.s32.totalorder %s124, %s125
      %p136 = scmp.eq.s32.totalorder %s20, 0
      %p137 = por %p135, %p136
      %p138 = scmp.ne.s32.totalorder %s124, %s125
      %p139 = scmp.eq.s32.totalorder %s21, 1
      %p140 = por %p138, %p139
      %p142 = scmp.ne.s32.totalorder %s125, %s141
      %p143 = scmp.eq.s32.totalorder %s21, 0
      %p144 = por %p142, %p143
      %p145 = scmp.le.s32.totalorder 1, %s15
      %p146 = scmp.lt.s32.totalorder %s15, 3
      %p147 = pnand %p145, %p146
      %p148 = pneg %p147
      // Predicated region
      $region9: #{tpu_custom_call.1} parent=5 // pred_check
        _
      $region10: #{tpu_custom_call.1} parent=5 // pred_check_branch
        %150 = sbr.rel (%p147) target = $region12
      $region11: #{tpu_custom_call.1} parent=5 // pred_region
        %s151 = ssub.s32 %s15, 1
      $region12: #{tpu_custom_call.1} parent=5 // pred_fallthru
        _
      %p152 = scmp.lt.s32.totalorder %s15, 2
      // Predicated region
      $region13: #{tpu_custom_call.1} parent=5 // pred_check
        %p153 = pneg %p152
      $region14: #{tpu_custom_call.1} parent=5 // pred_check_branch
        %155 = sbr.rel (%p153) target = $region16
      $region15: #{tpu_custom_call.1} parent=5 // pred_region
        // Predicated region
        $region17: #{tpu_custom_call.1} parent=15 // pred_check
          %p156 = pneg %p49
        $region18: #{tpu_custom_call.1} parent=15 // pred_check_branch
          %158 = sbr.rel (%p156) target = $region20
        $region19: #{tpu_custom_call.1} parent=15 // pred_region
          %s159 = sand.u32 %s39, 1
          %s160 = scalar_lea.sflag [#allocation4], %s159
          %s161 = sand.u32 %s39, 1
          %s162 = smul.addr %s161, 8
          %s163 = scalar_lea.vmem [#allocation3], %s162
          %s164 = sadd.s32 %s22, %s23
          %s166 = ssub.s32 128, 128
          %167 = vsyncadd %s160, %s166
          %s168 = smul.addr %s164, 128
          %s169 = scalar_lea.hbm %s0, %s168
          %s171 = sshll.u32 %s163, 4
          %s172 = int_to_ptr.vmem [resolvable:$true] %s171
          %174 = dma.hbm_to_vmem [thread:$0]  %s169, 128, %s172, %s160
        $region20: #{tpu_custom_call.1} parent=15 // pred_fallthru
          _
        // Predicated region
        $region21: #{tpu_custom_call.1} parent=15 // pred_check
          %p175 = pneg %p77
        $region22: #{tpu_custom_call.1} parent=15 // pred_check_branch
          %177 = sbr.rel (%p175) target = $region24
        $region23: #{tpu_custom_call.1} parent=15 // pred_region
          %s178 = sand.u32 %s15, 1
          %s179 = scalar_lea.sflag [#allocation6], %s178
          %s180 = sand.u32 %s67, 1
          %s181 = smul.addr %s180, 4
          %s182 = scalar_lea.vmem [#allocation5], %s181
          %s183 = sadd.s32 %s22, %s23
          %s185 = ssub.s32 64, 64
          %186 = vsyncadd %s179, %s185
          %s187 = smul.addr %s183, 64
          %s188 = scalar_lea.hbm %s1, %s187
          %s190 = sshll.u32 %s182, 4
          %s191 = int_to_ptr.vmem [resolvable:$true] %s190
          %193 = dma.hbm_to_vmem [thread:$0]  %s188, 64, %s191, %s179
        $region24: #{tpu_custom_call.1} parent=15 // pred_fallthru
          _
        // Predicated region
        $region25: #{tpu_custom_call.1} parent=15 // pred_check
          %p194 = pneg %p105
        $region26: #{tpu_custom_call.1} parent=15 // pred_check_branch
          %196 = sbr.rel (%p194) target = $region28
        $region27: #{tpu_custom_call.1} parent=15 // pred_region
          %s197 = sand.u32 %s15, 1
          %s198 = scalar_lea.sflag [#allocation6], %s197
          %s199 = sand.u32 %s95, 1
          %s200 = smul.addr %s199, 4
          %s201 = scalar_lea.vmem [#allocation7], %s200
          %s202 = sadd.s32 %s22, %s23
          %s204 = ssub.s32 64, 64
          %205 = vsyncadd %s198, %s204
          %s206 = smul.addr %s202, 64
          %s207 = scalar_lea.hbm %s2, %s206
          %s209 = sshll.u32 %s201, 4
          %s210 = int_to_ptr.vmem [resolvable:$true] %s209
          %212 = dma.hbm_to_vmem [thread:$0]  %s207, 64, %s210, %s198
        $region28: #{tpu_custom_call.1} parent=15 // pred_fallthru
          _
      $region16: #{tpu_custom_call.1} parent=5 // pred_fallthru
        _
      %p213 = scmp.le.s32.totalorder 1, %s15
      %p214 = scmp.lt.s32.totalorder %s15, 3
      %p215 = pnand %p213, %p214
      %p216 = pneg %p215
      // Predicated region
      $region29: #{tpu_custom_call.1} parent=5 // pred_check
        _
      $region30: #{tpu_custom_call.1} parent=5 // pred_check_branch
        %218 = sbr.rel (%p215) target = $region32
      $region31: #{tpu_custom_call.1} parent=5 // pred_region
        %s219 = ssub.s32 %s15, 1
        %s220 = sand.u32 %s42, 1
        %s221 = scalar_lea.sflag [#allocation4], %s220
        %s222 = sand.u32 %s42, 1
        %s223 = smul.addr %s222, 8
        %s224 = scalar_lea.vmem [#allocation3], %s223
        // Predicated region
        $region33: #{tpu_custom_call.1} parent=31 // pred_check
          %p225 = pneg %p55
        $region34: #{tpu_custom_call.1} parent=31 // pred_check_branch
          %227 = sbr.rel (%p225) target = $region36
        $region35: #{tpu_custom_call.1} parent=31 // pred_region
          %228 = dma.done %s221, 128
        $region36: #{tpu_custom_call.1} parent=31 // pred_fallthru
          _
        %s229 = sand.u32 %s20, 1
        %s230 = scalar_lea.sflag [#allocation6], %s229
        %s231 = sand.u32 %s70, 1
        %s232 = smul.addr %s231, 4
        %s233 = scalar_lea.vmem [#allocation5], %s232
        // Predicated region
        $region37: #{tpu_custom_call.1} parent=31 // pred_check
          %p234 = pneg %p83
        $region38: #{tpu_custom_call.1} parent=31 // pred_check_branch
          %236 = sbr.rel (%p234) target = $region40
        $region39: #{tpu_custom_call.1} parent=31 // pred_region
          %237 = dma.done %s230, 64
        $region40: #{tpu_custom_call.1} parent=31 // pred_fallthru
          _
        %s238 = sand.u32 %s20, 1
        %s239 = scalar_lea.sflag [#allocation6], %s238
        %s240 = sand.u32 %s98, 1
        %s241 = smul.addr %s240, 4
        %s242 = scalar_lea.vmem [#allocation7], %s241
        // Predicated region
        $region41: #{tpu_custom_call.1} parent=31 // pred_check
          %p243 = pneg %p111
        $region42: #{tpu_custom_call.1} parent=31 // pred_check_branch
          %245 = sbr.rel (%p243) target = $region44
        $region43: #{tpu_custom_call.1} parent=31 // pred_region
          %246 = dma.done %s239, 64
        $region44: #{tpu_custom_call.1} parent=31 // pred_fallthru
          _
        %s247 = sand.u32 %s42, 1
        %s248 = scalar_lea.sflag [#allocation4], %s247
        %s249 = sand.u32 %s42, 1
        %s250 = smul.addr %s249, 8
        %s251 = scalar_lea.vmem [#allocation3], %s250
        %p252 = pneg %p55
        %p253 = pneg %p52
        %s254 = sand.u32 %s20, 1
        %s255 = scalar_lea.sflag [#allocation6], %s254
        %s256 = sand.u32 %s70, 1
        %s257 = smul.addr %s256, 4
        %s258 = scalar_lea.vmem [#allocation5], %s257
        %p259 = pneg %p83
        %p260 = pneg %p80
        %s261 = sand.u32 %s20, 1
        %s262 = scalar_lea.sflag [#allocation6], %s261
        %s263 = sand.u32 %s98, 1
        %s264 = smul.addr %s263, 4
        %s265 = scalar_lea.vmem [#allocation7], %s264
        %p266 = pneg %p111
        %p267 = pneg %p108
        %p268 = pneg %p137
        %p269 = pneg %p134
        %p270 = scmp.lt.s32.totalorder %s24, 1
        %s271 = scalar_select %p270, %s24, 1
        %s272 = scalar_lea.vmem %s3, %s271
        %s273 = sadd.s32 %s24, %s25
        %s274 = sadd.s32 %s24, %s25
        %s275 = sadd.s32 %s24, %s25
        %p276 = scmp.lt.s32.totalorder %s24, 1
        %s277 = scalar_select %p276, %s24, 1
        %s278 = scalar_lea.vmem %s3, %s277
        %p279 = scmp.eq.s32.totalorder %s25, 0
        // Predicated region
        $region45: #{tpu_custom_call.1} parent=31 // pred_check
          %p280 = pneg %p279
        $region46: #{tpu_custom_call.1} parent=31 // pred_check_branch
          %282 = sbr.rel (%p280) target = $region48
        $region47: #{tpu_custom_call.1} parent=31 // pred_region
          %283 = vst [vmem:[#allocation2] sm:$0x1] 0.0
        $region48: #{tpu_custom_call.1} parent=31 // pred_fallthru
          _
        %v284 = vld [vmem:[%s224] sm:$0x1f]
        %v285 = vld [vmem:[%s233] sm:$0xf]
        %v286 = vld [vmem:[%s242] sm:$0xf]
        %v287 = vcvt.f32.s32.to.zero.pseudo %v284
        %v288 = vlaneseq
        %v289 = vshrl.u32 %v288, 7
        %v290 = vlaneseq
        %v291 = vshrl.u32 %v290, 7
        %v292 = vsub.s32 4, %v291
        %v293 = vrot.slane %v287, %v292
        %vm294 = vcmp.eq.s32.totalorder %v289, %v293
        %v295 = vsel %vm294, %v285, 0.0
        %vm296 = vcmask 1043456
        %v297 = vsel %vm296, %v295, 0.0
        %v298 = vrot.slane %v297, 4
        %v299 = vadd.f32 %v297, %v298
        %v300 = vrot.slane %v299, 2
        %v301 = vadd.f32 %v299, %v300
        %v302 = vrot.slane %v301, 1
        %v303 = vadd.f32 %v301, %v302
        %v304 = vsel %vm294, %v286, 0.0
        %v305 = vsel %vm296, %v304, 0.0
        %v306 = vrot.slane %v305, 4
        %v307 = vadd.f32 %v305, %v306
        %v308 = vrot.slane %v307, 2
        %v309 = vadd.f32 %v307, %v308
        %v310 = vrot.slane %v309, 1
        %v311 = vadd.f32 %v309, %v310
        %v312 = vsub.f32 %v303, %v311
        %v314 = vrot.slane %v284, 1
        %v316 = vsub.f32 %v284, %v314
        %v317 = vand.u32 2147483647, %v312
        %vm318 = vcmp.gt.f32.partialorder %v312, 0.0
        %v319 = vsub.f32 0.0, %v316
        %v320 = vsel %vm318, %v316, %v319
        %v321 = vsub.f32 %v317, %v320
        %v322 = vmax.f32 %v321, 0.0
        %v323 = vrot.slane %v284, 2
        %v325 = vsub.f32 %v284, %v323
        %v326 = vmul.f32 %v325, %v325
        %v328 = vrot.slane %v326, 1
        %v330 = vadd.f32 %v326, %v328
        %v331 = vld [vmem:[#allocation2] sm:$0x1]
        %v332 = vmul.f32 %v322, 0.2
        %v333 = vadd.f32 %v332, %v330
        %v334 = vadd.f32 %v331, %v333
        %335 = vst [vmem:[#allocation2] sm:$0x1] %v334
        // Predicated region
        $region49: #{tpu_custom_call.1} parent=31 // pred_check
          %p336 = pneg %p279
        $region50: #{tpu_custom_call.1} parent=31 // pred_check_branch
          %338 = sbr.rel (%p336) target = $region52
        $region51: #{tpu_custom_call.1} parent=31 // pred_region
          %v339 = vld [vmem:[#allocation2] sm:$0x1]
          %vm340 = vcmask 1040384
          %v341 = vsel %vm340, %v339, 0.0
          %342 = vadd.xlane.f32.xlu0 %v341
          %v343 = vpop.xlane.xlu0 %342
          %v344 = vmul.f32 %v343, 0.125
          %vm345 = vcmask 0
          %346 = vst.msk [vmem:[%s278] sm:$0x1] %vm345, %v344
        $region52: #{tpu_custom_call.1} parent=31 // pred_fallthru
          _
        %p347 = scmp.lt.s32.totalorder %s24, 1
        %s348 = scalar_select %p347, %s24, 1
        %s349 = scalar_lea.vmem %s3, %s348
        // Predicated region
        $region53: #{tpu_custom_call.1} parent=31 // pred_check
          %p350 = pneg %p134
        $region54: #{tpu_custom_call.1} parent=31 // pred_check_branch
          %352 = sbr.rel (%p350) target = $region56
        $region55: #{tpu_custom_call.1} parent=31 // pred_region
          _
        $region56: #{tpu_custom_call.1} parent=31 // pred_fallthru
          _
      $region32: #{tpu_custom_call.1} parent=5 // pred_fallthru
        _
      %p353 = scmp.le.s32.totalorder 2, %s15
      // Predicated region
      $region57: #{tpu_custom_call.1} parent=5 // pred_check
        %p354 = pneg %p353
      $region58: #{tpu_custom_call.1} parent=5 // pred_check_branch
        %356 = sbr.rel (%p354) target = $region60
      $region59: #{tpu_custom_call.1} parent=5 // pred_region
        %s357 = ssub.s32 %s15, 2
        // Predicated region
        $region61: #{tpu_custom_call.1} parent=59 // pred_check
          %p358 = pneg %p140
        $region62: #{tpu_custom_call.1} parent=59 // pred_check_branch
          %360 = sbr.rel (%p358) target = $region64
        $region63: #{tpu_custom_call.1} parent=59 // pred_region
          %p361 = scmp.lt.s32.totalorder %s26, 1
          %s362 = scalar_select %p361, %s26, 1
          %s363 = scalar_lea.vmem %s3, %s362
        $region64: #{tpu_custom_call.1} parent=59 // pred_fallthru
          _
      $region60: #{tpu_custom_call.1} parent=5 // pred_fallthru
        _
    $region6: #{tpu_custom_call.1} parent=1 // loop_footer
      %s19 = sadd.s32 1, %s15
    $region7: #{tpu_custom_call.1} parent=1 // loop_footer_branch
      %14 = sbr.rel target = $region3
    $region8: #{tpu_custom_call.1} parent=1 // loop_exit
      _
    %364 = vsyncpa [#allocation4], 1
    %s365 = scalar_lea.sflag [#allocation4], 1
    %366 = vsyncpa %s365, 1
    %367 = vsyncpa [#allocation6], 1
    %s368 = scalar_lea.sflag [#allocation6], 1
    %369 = vsyncpa %s368, 1

</llo_original>
